<compile_context>
chip_gen: v5e
topology: v5e:2x2
jax: 0.10.0
libtpu: 0.0.40
codegen_flags: <defaults>
</compile_context>

<pallas_src>
import functools

import jax
import jax.numpy as jnp
from jax import lax
from jax.experimental import pallas as pl
from jax.experimental.pallas import tpu as pltpu

EPS = 1e-5  # InstanceNorm2d default eps


# ----------------------------- kernel helpers -----------------------------

def _im2col_reflect3x3(a, width, col0, colw, row0, rowh):
    """im2col of a row-major flat image with 1-pixel reflect padding.

    a:     (C, H*W) flat activations (lane-dense, row-major spatial)
    width: W (static python int)
    col0 / colw / row0 / rowh: (1, H*W) boolean edge masks
                               (col==0, col==W-1, row==0, row==H-1)
    returns (9*C, H*W); K index = (kh*3 + kw)*C + ci, matching the
    OIHW -> (O, kh, kw, I) weight flattening done in the wrapper.
    """

    def left(t):    # t[:, p-1]   (p = 0 garbage, fixed by the col-0 mask)
        return jnp.concatenate([t[:, :1], t[:, :-1]], axis=1)

    def right(t):   # t[:, p+1]   (p = HW-1 garbage, fixed by the col-W-1 mask)
        return jnp.concatenate([t[:, 1:], t[:, -1:]], axis=1)

    def above(t):   # t[:, p-W]   (row 0 garbage, fixed by the row-0 mask)
        return jnp.concatenate([t[:, :width], t[:, :-width]], axis=1)

    def below(t):   # t[:, p+W]   (row H-1 garbage, fixed by the row-H-1 mask)
        return jnp.concatenate([t[:, width:], t[:, -width:]], axis=1)

    up, dn = above(a), below(a)
    r_m1 = jnp.where(row0, dn, up)   # kh=0: row h-1, reflect row -1 -> row 1
    r_p1 = jnp.where(rowh, up, dn)   # kh=2: row h+1, reflect row H -> row H-2

    taps = []
    for r in (r_m1, a, r_p1):        # kh = 0, 1, 2
        lo, ro = left(r), right(r)
        taps.append(jnp.where(col0, ro, lo))  # kw=0: col w-1, reflect -1 -> 1
        taps.append(r)                        # kw=1: col w
        taps.append(jnp.where(colw, lo, ro))  # kw=2: col w+1, reflect W -> W-2
    return jnp.concatenate(taps, axis=0)      # (9C, H*W)


def _instance_norm(y):
    """InstanceNorm2d(affine=False) over the flattened spatial axis (f32).

    Single reduction pass (sum + sum of squares)."""
    inv_hw = 1.0 / y.shape[1]
    s = jnp.sum(y, axis=1, keepdims=True)
    ss = jnp.sum(y * y, axis=1, keepdims=True)
    mean = s * inv_hw
    var = jnp.maximum(ss * inv_hw - mean * mean, 0.0)
    return (y - mean) * lax.rsqrt(var + EPS)


# ------------------------------- the kernel --------------------------------

def _resnet_block_kernel(x_ref, m_ref, w1_ref, w2_ref, o_ref, *, width,
                         compute_dtype):
    xf = x_ref[0].astype(jnp.float32)           # (C, H*W), lane-dense

    col0 = m_ref[0:1, :] > 0.5
    colw = m_ref[1:2, :] > 0.5
    row0 = m_ref[2:3, :] > 0.5
    rowh = m_ref[3:4, :] > 0.5

    def conv3x3(t, wref):
        col = _im2col_reflect3x3(t, width, col0, colw, row0, rowh)
        # One long-K contraction on the MXU: compute_dtype in, f32 accumulate.
        return jnp.dot(wref[...], col.astype(compute_dtype),
                       preferred_element_type=jnp.float32)

    # conv1 + InstanceNorm + ReLU   (bias cancelled exactly by the IN mean sub)
    y = conv3x3(xf, w1_ref)
    y = jnp.maximum(_instance_norm(y), 0.0)
    # TODO(synk): use_dropout=False branch chosen; Dropout(0.5) omitted.

    # conv2 + InstanceNorm
    y = conv3x3(y, w2_ref)
    y = _instance_norm(y)

    # residual add in f32, lane-dense store
    o_ref[0] = (xf + y).astype(o_ref.dtype)


# ------------------------------- the wrapper --------------------------------

@functools.partial(jax.jit, static_argnames=("compute_dtype",))
def resnet_block(x, w1, b1, w2, b2, *, compute_dtype=jnp.bfloat16):
    n, c, h, w = x.shape
    hw = h * w

    # The per-channel conv biases are mathematically cancelled by the
    # affine-free InstanceNorm that immediately follows each conv.
    del b1, b2

    # Lane-dense weight re-layout: OIHW -> (Cout, 9*Cin), K = (kh*3+kw)*Cin+ci.
    w1f = jnp.transpose(w1, (0, 2, 3, 1)).reshape(c, 9 * c).astype(compute_dtype)
    w2f = jnp.transpose(w2, (0, 2, 3, 1)).reshape(c, 9 * c).astype(compute_dtype)

    # Lane-dense activations: fold spatial dims (free reshape at HBM level).
    xf = x.reshape(n, c, hw)

    # Edge masks for the reflect boundary, computed once in plain XLA.
    pos = jnp.arange(hw, dtype=jnp.int32)
    colp = pos % w
    rowp = pos // w
    masks = jnp.stack([colp == 0, colp == w - 1,
                       rowp == 0, rowp == h - 1]).astype(jnp.float32)  # (4, hw)

    kernel = functools.partial(_resnet_block_kernel, width=w,
                               compute_dtype=compute_dtype)

    out = pl.pallas_call(
        kernel,
        out_shape=jax.ShapeDtypeStruct((n, c, hw), x.dtype),
        grid_spec=pltpu.PrefetchScalarGridSpec(
            num_scalar_prefetch=0,
            grid=(n,),
            in_specs=[
                pl.BlockSpec((1, c, hw), lambda i: (i, 0, 0)),
                pl.BlockSpec((4, hw), lambda i: (0, 0)),
                pl.BlockSpec((c, 9 * c), lambda i: (0, 0)),
                pl.BlockSpec((c, 9 * c), lambda i: (0, 0)),
            ],
            out_specs=pl.BlockSpec((1, c, hw), lambda i: (i, 0, 0)),
        ),
        compiler_params=pltpu.CompilerParams(
            dimension_semantics=("parallel",),        # shard batch over TCs
            vmem_limit_bytes=48 * 1024 * 1024,        # above 16/32 MiB defaults
        ),
    )(xf, masks, w1f, w2f)
    return out.reshape(n, c, h, w)


# ---------------------------- pure-JAX reference ----------------------------

def resnet_block_ref(x, w1, b1, w2, b2):
    """Exact PyTorch-module semantics (reflect pad, conv+bias, IN, ReLU)."""

    def pad(t):
        return jnp.pad(t, ((0, 0), (0, 0), (1, 1), (1, 1)), mode='reflect')

    def conv(t, wgt, b):
        y = lax.conv_general_dilated(
            t, wgt, window_strides=(1, 1), padding='VALID',
            dimension_numbers=('NCHW', 'OIHW', 'NCHW'))
        return y + b[None, :, None, None]

    def inorm(y):
        m = jnp.mean(y, axis=(2, 3), keepdims=True)
        v = jnp.mean((y - m) ** 2, axis=(2, 3), keepdims=True)
        return (y - m) / jnp.sqrt(v + EPS)

    y = conv(pad(x), w1, b1)
    y = jnp.maximum(inorm(y), 0.0)
    y = conv(pad(y), w2, b2)
    return x + inorm(y)


# ----------------------------------- main -----------------------------------

if __name__ == "__main__":
    key = jax.random.PRNGKey(0)
    k_x, k_w1, k_b1, k_w2, k_b2 = jax.random.split(key, 5)

    N, C, H, W = 2, 4, 16, 16
    x = jax.random.normal(k_x, (N, C, H, W), dtype=jnp.float32)

    # Synthetic parameters for Conv2d(dim, dim, 3, bias=True) x 2.
    w1 = 0.1 * jax.random.normal(k_w1, (C, C, 3, 3), dtype=jnp.float32)
    b1 = 0.1 * jax.random.normal(k_b1, (C,), dtype=jnp.float32)
    w2 = 0.1 * jax.random.normal(k_w2, (C, C, 3, 3), dtype=jnp.float32)
    b2 = 0.1 * jax.random.normal(k_b2, (C,), dtype=jnp.float32)

    ref = jax.block_until_ready(resnet_block_ref(x, w1, b1, w2, b2))

    # f32 path: tight check against the PyTorch-equivalent reference
    # (also validates that dropping the biases is exact).
    out_f32 = jax.block_until_ready(
        resnet_block(x, w1, b1, w2, b2, compute_dtype=jnp.float32))
    assert out_f32.shape == (N, C, H, W)
    err_f32 = jnp.max(jnp.abs(out_f32 - ref))
    assert jnp.allclose(out_f32, ref, atol=1e-3, rtol=1e-3), \
        f"f32 path max abs err {err_f32}"

    # bf16 MXU path with f32 accumulation: the fast default, looser tolerance.
    out_bf16 = jax.block_until_ready(
        resnet_block(x, w1, b1, w2, b2, compute_dtype=jnp.bfloat16))
    assert out_bf16.shape == (N, C, H, W)
    err_bf16 = jnp.max(jnp.abs(out_bf16 - ref))
    assert jnp.allclose(out_bf16, ref, atol=3e-2, rtol=3e-2), \
        f"bf16 path max abs err {err_bf16}"

    print("KERNEL_OK")
</pallas_src>

<mosaic_0001>
module attributes {stable_mosaic.version = 11 : i64} {
  func.func @_resnet_block_kernel(%arg0: i32, %arg1: memref<1x4x256xf32, #tpu.memory_space<vmem>>, %arg2: memref<4x256xf32, #tpu.memory_space<vmem>>, %arg3: memref<4x36xf32, #tpu.memory_space<vmem>>, %arg4: memref<4x36xf32, #tpu.memory_space<vmem>>, %arg5: memref<1x4x256xf32, #tpu.memory_space<vmem>>) attributes {dimension_semantics = [#tpu.dimension_semantics<parallel>], iteration_bounds = array<i64: 2>, scalar_prefetch = 0 : i64, scratch_operands = 0 : i64, tpu.core_type = #tpu.core_type<tc>, window_params = [{transform_indices = @transform_0, window_bounds = array<i64: 1, 4, 256>}, {pipeline_mode = #tpu.pipeline_mode<synchronous>, transform_indices = @transform_1, window_bounds = array<i64: 4, 256>}, {pipeline_mode = #tpu.pipeline_mode<synchronous>, transform_indices = @transform_2, window_bounds = array<i64: 4, 36>}, {pipeline_mode = #tpu.pipeline_mode<synchronous>, transform_indices = @transform_3, window_bounds = array<i64: 4, 36>}, {transform_indices = @transform_4, window_bounds = array<i64: 1, 4, 256>}]} {
    %c0 = arith.constant 0 : index
    %c0_0 = arith.constant 0 : index
    %c0_1 = arith.constant 0 : index
    %0 = vector.load %arg1[%c0, %c0_0, %c0_1] : memref<1x4x256xf32, #tpu.memory_space<vmem>>, vector<1x4x256xf32>
    %1 = vector.shape_cast %0 : vector<1x4x256xf32> to vector<4x256xf32>
    %c0_2 = arith.constant 0 : index
    %c0_3 = arith.constant 0 : index
    %2 = vector.load %arg2[%c0_2, %c0_3] : memref<4x256xf32, #tpu.memory_space<vmem>>, vector<1x256xf32>
    %cst = arith.constant 5.000000e-01 : f32
    %3 = vector.broadcast %cst : f32 to vector<1x256xf32>
    %4 = arith.cmpf ogt, %2, %3 : vector<1x256xf32>
    %c1 = arith.constant 1 : index
    %c0_4 = arith.constant 0 : index
    %5 = vector.load %arg2[%c1, %c0_4] : memref<4x256xf32, #tpu.memory_space<vmem>>, vector<1x256xf32>
    %cst_5 = arith.constant 5.000000e-01 : f32
    %6 = vector.broadcast %cst_5 : f32 to vector<1x256xf32>
    %7 = arith.cmpf ogt, %5, %6 : vector<1x256xf32>
    %c2 = arith.constant 2 : index
    %c0_6 = arith.constant 0 : index
    %8 = vector.load %arg2[%c2, %c0_6] : memref<4x256xf32, #tpu.memory_space<vmem>>, vector<1x256xf32>
    %cst_7 = arith.constant 5.000000e-01 : f32
    %9 = vector.broadcast %cst_7 : f32 to vector<1x256xf32>
    %10 = arith.cmpf ogt, %8, %9 : vector<1x256xf32>
    %c3 = arith.constant 3 : index
    %c0_8 = arith.constant 0 : index
    %11 = vector.load %arg2[%c3, %c0_8] : memref<4x256xf32, #tpu.memory_space<vmem>>, vector<1x256xf32>
    %cst_9 = arith.constant 5.000000e-01 : f32
    %12 = vector.broadcast %cst_9 : f32 to vector<1x256xf32>
    %13 = arith.cmpf ogt, %11, %12 : vector<1x256xf32>
    %14 = vector.extract_strided_slice %1 {offsets = [0, 0], sizes = [4, 16], strides = [1, 1]} : vector<4x256xf32> to vector<4x16xf32>
    %15 = vector.extract_strided_slice %1 {offsets = [0, 0], sizes = [4, 240], strides = [1, 1]} : vector<4x256xf32> to vector<4x240xf32>
    %16 = tpu.concatenate %14, %15 in 1 : vector<4x16xf32>, vector<4x240xf32> -> vector<4x256xf32>
    %17 = vector.extract_strided_slice %1 {offsets = [0, 16], sizes = [4, 240], strides = [1, 1]} : vector<4x256xf32> to vector<4x240xf32>
    %18 = vector.extract_strided_slice %1 {offsets = [0, 240], sizes = [4, 16], strides = [1, 1]} : vector<4x256xf32> to vector<4x16xf32>
    %19 = tpu.concatenate %17, %18 in 1 : vector<4x240xf32>, vector<4x16xf32> -> vector<4x256xf32>
    %20 = vector.shape_cast %10 : vector<1x256xi1> to vector<1x256xi1>
    %21 = vector.broadcast %20 : vector<1x256xi1> to vector<4x256xi1>
    %22 = arith.select %21, %19, %16 : vector<4x256xi1>, vector<4x256xf32>
    %23 = vector.shape_cast %13 : vector<1x256xi1> to vector<1x256xi1>
    %24 = vector.broadcast %23 : vector<1x256xi1> to vector<4x256xi1>
    %25 = arith.select %24, %16, %19 : vector<4x256xi1>, vector<4x256xf32>
    %26 = vector.extract_strided_slice %22 {offsets = [0, 0], sizes = [4, 1], strides = [1, 1]} : vector<4x256xf32> to vector<4x1xf32>
    %27 = vector.extract_strided_slice %22 {offsets = [0, 0], sizes = [4, 255], strides = [1, 1]} : vector<4x256xf32> to vector<4x255xf32>
    %28 = tpu.concatenate %26, %27 in 1 : vector<4x1xf32>, vector<4x255xf32> -> vector<4x256xf32>
    %29 = vector.extract_strided_slice %22 {offsets = [0, 1], sizes = [4, 255], strides = [1, 1]} : vector<4x256xf32> to vector<4x255xf32>
    %30 = vector.extract_strided_slice %22 {offsets = [0, 255], sizes = [4, 1], strides = [1, 1]} : vector<4x256xf32> to vector<4x1xf32>
    %31 = tpu.concatenate %29, %30 in 1 : vector<4x255xf32>, vector<4x1xf32> -> vector<4x256xf32>
    %32 = vector.shape_cast %4 : vector<1x256xi1> to vector<1x256xi1>
    %33 = vector.broadcast %32 : vector<1x256xi1> to vector<4x256xi1>
    %34 = arith.select %33, %31, %28 : vector<4x256xi1>, vector<4x256xf32>
    %35 = vector.shape_cast %7 : vector<1x256xi1> to vector<1x256xi1>
    %36 = vector.broadcast %35 : vector<1x256xi1> to vector<4x256xi1>
    %37 = arith.select %36, %28, %31 : vector<4x256xi1>, vector<4x256xf32>
    %38 = vector.extract_strided_slice %1 {offsets = [0, 0], sizes = [4, 1], strides = [1, 1]} : vector<4x256xf32> to vector<4x1xf32>
    %39 = vector.extract_strided_slice %1 {offsets = [0, 0], sizes = [4, 255], strides = [1, 1]} : vector<4x256xf32> to vector<4x255xf32>
    %40 = tpu.concatenate %38, %39 in 1 : vector<4x1xf32>, vector<4x255xf32> -> vector<4x256xf32>
    %41 = vector.extract_strided_slice %1 {offsets = [0, 1], sizes = [4, 255], strides = [1, 1]} : vector<4x256xf32> to vector<4x255xf32>
    %42 = vector.extract_strided_slice %1 {offsets = [0, 255], sizes = [4, 1], strides = [1, 1]} : vector<4x256xf32> to vector<4x1xf32>
    %43 = tpu.concatenate %41, %42 in 1 : vector<4x255xf32>, vector<4x1xf32> -> vector<4x256xf32>
    %44 = vector.shape_cast %4 : vector<1x256xi1> to vector<1x256xi1>
    %45 = vector.broadcast %44 : vector<1x256xi1> to vector<4x256xi1>
    %46 = arith.select %45, %43, %40 : vector<4x256xi1>, vector<4x256xf32>
    %47 = vector.shape_cast %7 : vector<1x256xi1> to vector<1x256xi1>
    %48 = vector.broadcast %47 : vector<1x256xi1> to vector<4x256xi1>
    %49 = arith.select %48, %40, %43 : vector<4x256xi1>, vector<4x256xf32>
    %50 = vector.extract_strided_slice %25 {offsets = [0, 0], sizes = [4, 1], strides = [1, 1]} : vector<4x256xf32> to vector<4x1xf32>
    %51 = vector.extract_strided_slice %25 {offsets = [0, 0], sizes = [4, 255], strides = [1, 1]} : vector<4x256xf32> to vector<4x255xf32>
    %52 = tpu.concatenate %50, %51 in 1 : vector<4x1xf32>, vector<4x255xf32> -> vector<4x256xf32>
    %53 = vector.extract_strided_slice %25 {offsets = [0, 1], sizes = [4, 255], strides = [1, 1]} : vector<4x256xf32> to vector<4x255xf32>
    %54 = vector.extract_strided_slice %25 {offsets = [0, 255], sizes = [4, 1], strides = [1, 1]} : vector<4x256xf32> to vector<4x1xf32>
    %55 = tpu.concatenate %53, %54 in 1 : vector<4x255xf32>, vector<4x1xf32> -> vector<4x256xf32>
    %56 = vector.shape_cast %4 : vector<1x256xi1> to vector<1x256xi1>
    %57 = vector.broadcast %56 : vector<1x256xi1> to vector<4x256xi1>
    %58 = arith.select %57, %55, %52 : vector<4x256xi1>, vector<4x256xf32>
    %59 = vector.shape_cast %7 : vector<1x256xi1> to vector<1x256xi1>
    %60 = vector.broadcast %59 : vector<1x256xi1> to vector<4x256xi1>
    %61 = arith.select %60, %52, %55 : vector<4x256xi1>, vector<4x256xf32>
    %62 = tpu.concatenate %34, %22, %37, %46, %1, %49, %58, %25, %61 in 0 : vector<4x256xf32>, vector<4x256xf32>, vector<4x256xf32>, vector<4x256xf32>, vector<4x256xf32>, vector<4x256xf32>, vector<4x256xf32>, vector<4x256xf32>, vector<4x256xf32> -> vector<36x256xf32>
    %c0_10 = arith.constant 0 : index
    %c0_11 = arith.constant 0 : index
    %63 = vector.load %arg3[%c0_10, %c0_11] : memref<4x36xf32, #tpu.memory_space<vmem>>, vector<4x36xf32>
    %cst_12 = arith.constant dense<0.000000e+00> : vector<4x256xf32>
    %64 = tpu.matmul %63, %62, %cst_12 {dimension_numbers = #tpu.dot_dimension_numbers<[1], [0], [0], [1], [0, 0, 1, 1], [], []>} : vector<4x36xf32>, vector<36x256xf32>, vector<4x256xf32> -> vector<4x256xf32>
    %cst_13 = arith.constant dense<0.000000e+00> : vector<4xf32>
    %65 = vector.multi_reduction <add>, %64, %cst_13 [1] : vector<4x256xf32> to vector<4xf32>
    %66 = vector.shape_cast %65 : vector<4xf32> to vector<4x1xf32>
    %67 = arith.mulf %64, %64 : vector<4x256xf32>
    %cst_14 = arith.constant dense<0.000000e+00> : vector<4xf32>
    %68 = vector.multi_reduction <add>, %67, %cst_14 [1] : vector<4x256xf32> to vector<4xf32>
    %69 = vector.shape_cast %68 : vector<4xf32> to vector<4x1xf32>
    %cst_15 = arith.constant 3.906250e-03 : f32
    %70 = vector.broadcast %cst_15 : f32 to vector<4x1xf32>
    %71 = arith.mulf %66, %70 : vector<4x1xf32>
    %cst_16 = arith.constant 3.906250e-03 : f32
    %72 = vector.broadcast %cst_16 : f32 to vector<4x1xf32>
    %73 = arith.mulf %69, %72 : vector<4x1xf32>
    %74 = arith.mulf %71, %71 : vector<4x1xf32>
    %75 = arith.subf %73, %74 : vector<4x1xf32>
    %cst_17 = arith.constant 0.000000e+00 : f32
    %76 = vector.broadcast %cst_17 : f32 to vector<4x1xf32>
    %77 = arith.maximumf %75, %76 : vector<4x1xf32>
    %78 = vector.broadcast %71 : vector<4x1xf32> to vector<4x256xf32>
    %79 = arith.subf %64, %78 : vector<4x256xf32>
    %cst_18 = arith.constant 9.99999974E-6 : f32
    %80 = vector.broadcast %cst_18 : f32 to vector<4x1xf32>
    %81 = arith.addf %77, %80 : vector<4x1xf32>
    %82 = math.rsqrt %81 : vector<4x1xf32>
    %83 = vector.broadcast %82 : vector<4x1xf32> to vector<4x256xf32>
    %84 = arith.mulf %79, %83 : vector<4x256xf32>
    %cst_19 = arith.constant 0.000000e+00 : f32
    %85 = vector.broadcast %cst_19 : f32 to vector<4x256xf32>
    %86 = arith.maximumf %84, %85 : vector<4x256xf32>
    %87 = vector.extract_strided_slice %86 {offsets = [0, 0], sizes = [4, 16], strides = [1, 1]} : vector<4x256xf32> to vector<4x16xf32>
    %88 = vector.extract_strided_slice %86 {offsets = [0, 0], sizes = [4, 240], strides = [1, 1]} : vector<4x256xf32> to vector<4x240xf32>
    %89 = tpu.concatenate %87, %88 in 1 : vector<4x16xf32>, vector<4x240xf32> -> vector<4x256xf32>
    %90 = vector.extract_strided_slice %86 {offsets = [0, 16], sizes = [4, 240], strides = [1, 1]} : vector<4x256xf32> to vector<4x240xf32>
    %91 = vector.extract_strided_slice %86 {offsets = [0, 240], sizes = [4, 16], strides = [1, 1]} : vector<4x256xf32> to vector<4x16xf32>
    %92 = tpu.concatenate %90, %91 in 1 : vector<4x240xf32>, vector<4x16xf32> -> vector<4x256xf32>
    %93 = vector.shape_cast %10 : vector<1x256xi1> to vector<1x256xi1>
    %94 = vector.broadcast %93 : vector<1x256xi1> to vector<4x256xi1>
    %95 = arith.select %94, %92, %89 : vector<4x256xi1>, vector<4x256xf32>
    %96 = vector.shape_cast %13 : vector<1x256xi1> to vector<1x256xi1>
    %97 = vector.broadcast %96 : vector<1x256xi1> to vector<4x256xi1>
    %98 = arith.select %97, %89, %92 : vector<4x256xi1>, vector<4x256xf32>
    %99 = vector.extract_strided_slice %95 {offsets = [0, 0], sizes = [4, 1], strides = [1, 1]} : vector<4x256xf32> to vector<4x1xf32>
    %100 = vector.extract_strided_slice %95 {offsets = [0, 0], sizes = [4, 255], strides = [1, 1]} : vector<4x256xf32> to vector<4x255xf32>
    %101 = tpu.concatenate %99, %100 in 1 : vector<4x1xf32>, vector<4x255xf32> -> vector<4x256xf32>
    %102 = vector.extract_strided_slice %95 {offsets = [0, 1], sizes = [4, 255], strides = [1, 1]} : vector<4x256xf32> to vector<4x255xf32>
    %103 = vector.extract_strided_slice %95 {offsets = [0, 255], sizes = [4, 1], strides = [1, 1]} : vector<4x256xf32> to vector<4x1xf32>
    %104 = tpu.concatenate %102, %103 in 1 : vector<4x255xf32>, vector<4x1xf32> -> vector<4x256xf32>
    %105 = vector.shape_cast %4 : vector<1x256xi1> to vector<1x256xi1>
    %106 = vector.broadcast %105 : vector<1x256xi1> to vector<4x256xi1>
    %107 = arith.select %106, %104, %101 : vector<4x256xi1>, vector<4x256xf32>
    %108 = vector.shape_cast %7 : vector<1x256xi1> to vector<1x256xi1>
    %109 = vector.broadcast %108 : vector<1x256xi1> to vector<4x256xi1>
    %110 = arith.select %109, %101, %104 : vector<4x256xi1>, vector<4x256xf32>
    %111 = vector.extract_strided_slice %86 {offsets = [0, 0], sizes = [4, 1], strides = [1, 1]} : vector<4x256xf32> to vector<4x1xf32>
    %112 = vector.extract_strided_slice %86 {offsets = [0, 0], sizes = [4, 255], strides = [1, 1]} : vector<4x256xf32> to vector<4x255xf32>
    %113 = tpu.concatenate %111, %112 in 1 : vector<4x1xf32>, vector<4x255xf32> -> vector<4x256xf32>
    %114 = vector.extract_strided_slice %86 {offsets = [0, 1], sizes = [4, 255], strides = [1, 1]} : vector<4x256xf32> to vector<4x255xf32>
    %115 = vector.extract_strided_slice %86 {offsets = [0, 255], sizes = [4, 1], strides = [1, 1]} : vector<4x256xf32> to vector<4x1xf32>
    %116 = tpu.concatenate %114, %115 in 1 : vector<4x255xf32>, vector<4x1xf32> -> vector<4x256xf32>
    %117 = vector.shape_cast %4 : vector<1x256xi1> to vector<1x256xi1>
    %118 = vector.broadcast %117 : vector<1x256xi1> to vector<4x256xi1>
    %119 = arith.select %118, %116, %113 : vector<4x256xi1>, vector<4x256xf32>
    %120 = vector.shape_cast %7 : vector<1x256xi1> to vector<1x256xi1>
    %121 = vector.broadcast %120 : vector<1x256xi1> to vector<4x256xi1>
    %122 = arith.select %121, %113, %116 : vector<4x256xi1>, vector<4x256xf32>
    %123 = vector.extract_strided_slice %98 {offsets = [0, 0], sizes = [4, 1], strides = [1, 1]} : vector<4x256xf32> to vector<4x1xf32>
    %124 = vector.extract_strided_slice %98 {offsets = [0, 0], sizes = [4, 255], strides = [1, 1]} : vector<4x256xf32> to vector<4x255xf32>
    %125 = tpu.concatenate %123, %124 in 1 : vector<4x1xf32>, vector<4x255xf32> -> vector<4x256xf32>
    %126 = vector.extract_strided_slice %98 {offsets = [0, 1], sizes = [4, 255], strides = [1, 1]} : vector<4x256xf32> to vector<4x255xf32>
    %127 = vector.extract_strided_slice %98 {offsets = [0, 255], sizes = [4, 1], strides = [1, 1]} : vector<4x256xf32> to vector<4x1xf32>
    %128 = tpu.concatenate %126, %127 in 1 : vector<4x255xf32>, vector<4x1xf32> -> vector<4x256xf32>
    %129 = vector.shape_cast %4 : vector<1x256xi1> to vector<1x256xi1>
    %130 = vector.broadcast %129 : vector<1x256xi1> to vector<4x256xi1>
    %131 = arith.select %130, %128, %125 : vector<4x256xi1>, vector<4x256xf32>
    %132 = vector.shape_cast %7 : vector<1x256xi1> to vector<1x256xi1>
    %133 = vector.broadcast %132 : vector<1x256xi1> to vector<4x256xi1>
    %134 = arith.select %133, %125, %128 : vector<4x256xi1>, vector<4x256xf32>
    %135 = tpu.concatenate %107, %95, %110, %119, %86, %122, %131, %98, %134 in 0 : vector<4x256xf32>, vector<4x256xf32>, vector<4x256xf32>, vector<4x256xf32>, vector<4x256xf32>, vector<4x256xf32>, vector<4x256xf32>, vector<4x256xf32>, vector<4x256xf32> -> vector<36x256xf32>
    %c0_20 = arith.constant 0 : index
    %c0_21 = arith.constant 0 : index
    %136 = vector.load %arg4[%c0_20, %c0_21] : memref<4x36xf32, #tpu.memory_space<vmem>>, vector<4x36xf32>
    %cst_22 = arith.constant dense<0.000000e+00> : vector<4x256xf32>
    %137 = tpu.matmul %136, %135, %cst_22 {dimension_numbers = #tpu.dot_dimension_numbers<[1], [0], [0], [1], [0, 0, 1, 1], [], []>} : vector<4x36xf32>, vector<36x256xf32>, vector<4x256xf32> -> vector<4x256xf32>
    %cst_23 = arith.constant dense<0.000000e+00> : vector<4xf32>
    %138 = vector.multi_reduction <add>, %137, %cst_23 [1] : vector<4x256xf32> to vector<4xf32>
    %139 = vector.shape_cast %138 : vector<4xf32> to vector<4x1xf32>
    %140 = arith.mulf %137, %137 : vector<4x256xf32>
    %cst_24 = arith.constant dense<0.000000e+00> : vector<4xf32>
    %141 = vector.multi_reduction <add>, %140, %cst_24 [1] : vector<4x256xf32> to vector<4xf32>
    %142 = vector.shape_cast %141 : vector<4xf32> to vector<4x1xf32>
    %cst_25 = arith.constant 3.906250e-03 : f32
    %143 = vector.broadcast %cst_25 : f32 to vector<4x1xf32>
    %144 = arith.mulf %139, %143 : vector<4x1xf32>
    %cst_26 = arith.constant 3.906250e-03 : f32
    %145 = vector.broadcast %cst_26 : f32 to vector<4x1xf32>
    %146 = arith.mulf %142, %145 : vector<4x1xf32>
    %147 = arith.mulf %144, %144 : vector<4x1xf32>
    %148 = arith.subf %146, %147 : vector<4x1xf32>
    %cst_27 = arith.constant 0.000000e+00 : f32
    %149 = vector.broadcast %cst_27 : f32 to vector<4x1xf32>
    %150 = arith.maximumf %148, %149 : vector<4x1xf32>
    %151 = vector.broadcast %144 : vector<4x1xf32> to vector<4x256xf32>
    %152 = arith.subf %137, %151 : vector<4x256xf32>
    %cst_28 = arith.constant 9.99999974E-6 : f32
    %153 = vector.broadcast %cst_28 : f32 to vector<4x1xf32>
    %154 = arith.addf %150, %153 : vector<4x1xf32>
    %155 = math.rsqrt %154 : vector<4x1xf32>
    %156 = vector.broadcast %155 : vector<4x1xf32> to vector<4x256xf32>
    %157 = arith.mulf %152, %156 : vector<4x256xf32>
    %158 = arith.addf %1, %157 : vector<4x256xf32>
    %c0_29 = arith.constant 0 : index
    %c0_30 = arith.constant 0 : index
    %c0_31 = arith.constant 0 : index
    %159 = vector.load %arg5[%c0_29, %c0_30, %c0_31] : memref<1x4x256xf32, #tpu.memory_space<vmem>>, vector<1x4x256xf32>
    %160 = vector.shape_cast %159 : vector<1x4x256xf32> to vector<4x256xf32>
    %161 = vector.shape_cast %158 : vector<4x256xf32> to vector<1x4x256xf32>
    tpu.vector_store %arg5[%c0_29, %c0_30, %c0_31], %161 {strides = array<i32>} : memref<1x4x256xf32, #tpu.memory_space<vmem>>, vector<1x4x256xf32>,
    return
  }
  func.func @transform_0(%arg0: i32) -> (i32, i32, i32) {
    %c0_i32 = arith.constant 0 : i32
    %c0_i32_0 = arith.constant 0 : i32
    %c0_i32_1 = arith.constant 0 : i32
    return %arg0, %c0_i32, %c0_i32_0 : i32, i32, i32
  }
  func.func @transform_1(%arg0: i32) -> (i32, i32) {
    %c0_i32 = arith.constant 0 : i32
    %c0_i32_0 = arith.constant 0 : i32
    %c0_i32_1 = arith.constant 0 : i32
    return %c0_i32, %c0_i32_0 : i32, i32
  }
  func.func @transform_2(%arg0: i32) -> (i32, i32) {
    %c0_i32 = arith.constant 0 : i32
    %c0_i32_0 = arith.constant 0 : i32
    %c0_i32_1 = arith.constant 0 : i32
    return %c0_i32, %c0_i32_0 : i32, i32
  }
  func.func @transform_3(%arg0: i32) -> (i32, i32) {
    %c0_i32 = arith.constant 0 : i32
    %c0_i32_0 = arith.constant 0 : i32
    %c0_i32_1 = arith.constant 0 : i32
    return %c0_i32, %c0_i32_0 : i32, i32
  }
  func.func @transform_4(%arg0: i32) -> (i32, i32, i32) {
    %c0_i32 = arith.constant 0 : i32
    %c0_i32_0 = arith.constant 0 : i32
    %c0_i32_1 = arith.constant 0 : i32
    return %arg0, %c0_i32, %c0_i32_0 : i32, i32, i32
  }
}

</mosaic_0001>

<llo_original>
// kernel: resnet_block.1
$region0: #{resnet_block.1}
  #allocation0 [shape = 'u32[]', space=smem, size = 0x4, offset = 0x4, fixed_abs, tag = 'smem constant byte address 0x4 - core index']
  #allocation1 [shape = 'u32[72,128]{1,0:T(1,128)}', space=vmem, size = 0x9000, scoped, tag = 'internal scratch']
  %s0 = inlined_call_operand.vmem [shape: f32[2,4,256], index: 0, kind: input, shape index: {}]
  %s1 = inlined_call_operand.vmem [shape: f32[4,256], index: 1, kind: input, shape index: {}]
  %s2 = inlined_call_operand.vmem [shape: f32[4,36], index: 2, kind: input, shape index: {}]
  %s3 = inlined_call_operand.vmem [shape: f32[4,36], index: 3, kind: input, shape index: {}]
  %s4 = inlined_call_operand.vmem [shape: f32[2,4,256], index: 4, kind: output, shape index: {}]
  %s5 = sld [smem:[#allocation0]]
  $region49: #{resnet_block.1} parent=0
    _
  %s7 = ssub.s32 1, %s5
  %s8 = scalar_select 0, %s7, %s5
  loop: start=0, step=1, limit=4
  $region2: #{resnet_block.1} parent=0 // loop_pre_header
    _
  $region3: #{resnet_block.1} parent=0 // loop_header
    %s10 = sphi 0, %s14
    %p11 = scmp.ge.s32.totalorder %s10, 4
    %s20 = sphi 0, %s22
    %s23 = sphi 0, %s20
    %s24 = sphi 0, %s23
    %s40 = sphi 0, %s24
    %s44 = sphi 0, %s44
    %s46 = sphi 0, %s44
    %s47 = sphi 0, %s46
    %s61 = sphi 0, %s47
    %s65 = sphi 0, %s65
    %s67 = sphi 0, %s65
    %s68 = sphi 0, %s67
    %s82 = sphi 0, %s68
    %s86 = sphi 0, %s86
    %s88 = sphi 0, %s86
    %s89 = sphi 0, %s88
    %s103 = sphi 0, %s89
    %s109 = sphi 0, %s111
    %s112 = sphi 0, %s109
    %s113 = sphi 0, %s112
    %s129 = sphi 0, %s113
  $region4: #{resnet_block.1} parent=0 // loop_header_branch
    %13 = sbr.rel (%p11) target = $region8
  $region5: #{resnet_block.1} parent=0 // loop_body
    %s15 = ssub.s32 %s10, 1
    %s16 = ssub.s32 %s10, 2
    %s17 = sadd.s32 %s10, 1
    %s18 = ssub.s32 %s10, %s17
    %p19 = scmp.eq.s32.totalorder %s18, 0
    %s21 = sadd.s32 %s20, 1
    %s22 = scalar_select %p19, %s20, %s21
    %p25 = pneg %p19
    %p26 = scmp.eq.s32.totalorder %s10, 1
    %p27 = por %p25, %p26
    %p28 = scmp.ne.s32.totalorder %s20, %s23
    %p29 = scmp.eq.s32.totalorder %s10, 0
    %p30 = por %p28, %p29
    %p31 = scmp.ne.s32.totalorder %s20, %s23
    %p32 = scmp.eq.s32.totalorder %s15, 1
    %p33 = por %p31, %p32
    %p34 = scmp.ne.s32.totalorder %s23, %s24
    %p35 = scmp.eq.s32.totalorder %s15, 0
    %p36 = por %p34, %p35
    %p37 = scmp.ne.s32.totalorder %s23, %s24
    %p38 = scmp.eq.s32.totalorder %s16, 1
    %p39 = por %p37, %p38
    %p41 = scmp.ne.s32.totalorder %s24, %s40
    %p42 = scmp.eq.s32.totalorder %s16, 0
    %p43 = por %p41, %p42
    %s45 = sadd.s32 %s44, 1
    %p48 = scmp.eq.s32.totalorder %s10, 1
    %p49 = scmp.ne.s32.totalorder %s44, %s46
    %p50 = scmp.eq.s32.totalorder %s10, 0
    %p51 = por %p49, %p50
    %p52 = scmp.ne.s32.totalorder %s44, %s46
    %p53 = scmp.eq.s32.totalorder %s15, 1
    %p54 = por %p52, %p53
    %p55 = scmp.ne.s32.totalorder %s46, %s47
    %p56 = scmp.eq.s32.totalorder %s15, 0
    %p57 = por %p55, %p56
    %p58 = scmp.ne.s32.totalorder %s46, %s47
    %p59 = scmp.eq.s32.totalorder %s16, 1
    %p60 = por %p58, %p59
    %p62 = scmp.ne.s32.totalorder %s47, %s61
    %p63 = scmp.eq.s32.totalorder %s16, 0
    %p64 = por %p62, %p63
    %s66 = sadd.s32 %s65, 1
    %p69 = scmp.eq.s32.totalorder %s10, 1
    %p70 = scmp.ne.s32.totalorder %s65, %s67
    %p71 = scmp.eq.s32.totalorder %s10, 0
    %p72 = por %p70, %p71
    %p73 = scmp.ne.s32.totalorder %s65, %s67
    %p74 = scmp.eq.s32.totalorder %s15, 1
    %p75 = por %p73, %p74
    %p76 = scmp.ne.s32.totalorder %s67, %s68
    %p77 = scmp.eq.s32.totalorder %s15, 0
    %p78 = por %p76, %p77
    %p79 = scmp.ne.s32.totalorder %s67, %s68
    %p80 = scmp.eq.s32.totalorder %s16, 1
    %p81 = por %p79, %p80
    %p83 = scmp.ne.s32.totalorder %s68, %s82
    %p84 = scmp.eq.s32.totalorder %s16, 0
    %p85 = por %p83, %p84
    %s87 = sadd.s32 %s86, 1
    %p90 = scmp.eq.s32.totalorder %s10, 1
    %p91 = scmp.ne.s32.totalorder %s86, %s88
    %p92 = scmp.eq.s32.totalorder %s10, 0
    %p93 = por %p91, %p92
    %p94 = scmp.ne.s32.totalorder %s86, %s88
    %p95 = scmp.eq.s32.totalorder %s15, 1
    %p96 = por %p94, %p95
    %p97 = scmp.ne.s32.totalorder %s88, %s89
    %p98 = scmp.eq.s32.totalorder %s15, 0
    %p99 = por %p97, %p98
    %p100 = scmp.ne.s32.totalorder %s88, %s89
    %p101 = scmp.eq.s32.totalorder %s16, 1
    %p102 = por %p100, %p101
    %p104 = scmp.ne.s32.totalorder %s89, %s103
    %p105 = scmp.eq.s32.totalorder %s16, 0
    %p106 = por %p104, %p105
    %s107 = ssub.s32 %s10, %s17
    %p108 = scmp.eq.s32.totalorder %s107, 0
    %s110 = sadd.s32 %s109, 1
    %s111 = scalar_select %p108, %s109, %s110
    %p114 = pneg %p108
    %p115 = scmp.eq.s32.totalorder %s10, 1
    %p116 = por %p114, %p115
    %p117 = scmp.ne.s32.totalorder %s109, %s112
    %p118 = scmp.eq.s32.totalorder %s10, 0
    %p119 = por %p117, %p118
    %p120 = scmp.ne.s32.totalorder %s109, %s112
    %p121 = scmp.eq.s32.totalorder %s15, 1
    %p122 = por %p120, %p121
    %p123 = scmp.ne.s32.totalorder %s112, %s113
    %p124 = scmp.eq.s32.totalorder %s15, 0
    %p125 = por %p123, %p124
    %p126 = scmp.ne.s32.totalorder %s112, %s113
    %p127 = scmp.eq.s32.totalorder %s16, 1
    %p128 = por %p126, %p127
    %p130 = scmp.ne.s32.totalorder %s113, %s129
    %p131 = scmp.eq.s32.totalorder %s16, 0
    %p132 = por %p130, %p131
    %p133 = scmp.le.s32.totalorder 1, %s10
    %p134 = scmp.lt.s32.totalorder %s10, 3
    %p135 = pnand %p133, %p134
    %p136 = pneg %p135
    // Predicated region
    $region9: #{resnet_block.1} parent=5 // pred_check
      _
    $region10: #{resnet_block.1} parent=5 // pred_check_branch
      %138 = sbr.rel (%p135) target = $region12
    $region11: #{resnet_block.1} parent=5 // pred_region
      %s139 = ssub.s32 %s10, 1
      // Predicated region
      $region13: #{resnet_block.1} parent=11 // pred_check
        %p140 = pneg %p57
      $region14: #{resnet_block.1} parent=11 // pred_check_branch
        %142 = sbr.rel (%p140) target = $region16
      $region15: #{resnet_block.1} parent=11 // pred_region
        _
      $region16: #{resnet_block.1} parent=11 // pred_fallthru
        _
      // Predicated region
      $region17: #{resnet_block.1} parent=11 // pred_check
        %p143 = pneg %p78
      $region18: #{resnet_block.1} parent=11 // pred_check_branch
        %145 = sbr.rel (%p143) target = $region20
      $region19: #{resnet_block.1} parent=11 // pred_region
        _
      $region20: #{resnet_block.1} parent=11 // pred_fallthru
        _
      // Predicated region
      $region21: #{resnet_block.1} parent=11 // pred_check
        %p146 = pneg %p99
      $region22: #{resnet_block.1} parent=11 // pred_check_branch
        %148 = sbr.rel (%p146) target = $region24
      $region23: #{resnet_block.1} parent=11 // pred_region
        _
      $region24: #{resnet_block.1} parent=11 // pred_fallthru
        _
    $region12: #{resnet_block.1} parent=5 // pred_fallthru
      _
    %p149 = scmp.lt.s32.totalorder %s10, 2
    // Predicated region
    $region25: #{resnet_block.1} parent=5 // pred_check
      %p150 = pneg %p149
    $region26: #{resnet_block.1} parent=5 // pred_check_branch
      %152 = sbr.rel (%p150) target = $region28
    $region27: #{resnet_block.1} parent=5 // pred_region
      // Predicated region
      $region29: #{resnet_block.1} parent=27 // pred_check
        %p153 = pneg %p30
      $region30: #{resnet_block.1} parent=27 // pred_check_branch
        %155 = sbr.rel (%p153) target = $region32
      $region31: #{resnet_block.1} parent=27 // pred_region
        %p156 = scmp.lt.s32.totalorder %s10, 1
        %s157 = scalar_select %p156, %s10, 1
        %s158 = smul.addr %s157, 2
        %s159 = smul.addr %s158, 4
        %s160 = scalar_lea.vmem %s0, %s159
      $region32: #{resnet_block.1} parent=27 // pred_fallthru
        _
    $region28: #{resnet_block.1} parent=5 // pred_fallthru
      _
    %p161 = scmp.le.s32.totalorder 1, %s10
    %p162 = scmp.lt.s32.totalorder %s10, 3
    %p163 = pnand %p161, %p162
    %p164 = pneg %p163
    // Predicated region
    $region33: #{resnet_block.1} parent=5 // pred_check
      _
    $region34: #{resnet_block.1} parent=5 // pred_check_branch
      %166 = sbr.rel (%p163) target = $region36
    $region35: #{resnet_block.1} parent=5 // pred_region
      %s167 = ssub.s32 %s10, 1
      %p168 = scmp.lt.s32.totalorder %s15, 1
      %s169 = scalar_select %p168, %s15, 1
      %s170 = smul.addr %s169, 2
      %s171 = smul.addr %s170, 4
      %s172 = scalar_lea.vmem %s0, %s171
      %p173 = pneg %p36
      %p174 = pneg %p33
      %p175 = pneg %p57
      %p176 = pneg %p54
      %p177 = pneg %p78
      %p178 = pneg %p75
      %p179 = pneg %p99
      %p180 = pneg %p96
      %p181 = pneg %p125
      %p182 = pneg %p122
      %p183 = scmp.lt.s32.totalorder %s15, 1
      %s184 = scalar_select %p183, %s15, 1
      %s185 = smul.addr %s184, 2
      %s186 = smul.addr %s185, 4
      %s187 = scalar_lea.vmem %s4, %s186
      %p188 = scmp.lt.s32.totalorder %s15, 1
      %s189 = scalar_select %p188, %s15, 1
      %s190 = smul.addr %s189, 2
      %s191 = smul.addr %s190, 4
      %s192 = scalar_lea.vmem %s0, %s191
      %p193 = scmp.lt.s32.totalorder %s15, 1
      %s194 = scalar_select %p193, %s15, 1
      %s195 = smul.addr %s194, 2
      %s196 = smul.addr %s195, 4
      %s197 = scalar_lea.vmem %s4, %s196
      %v198 = vld [vmem:[%s192] sm:$0xff]
      %v199 = vld [vmem:[%s1] ss:$4 sm:$0x3]
      %vm200 = vcmp.gt.f32.partialorder %v199, 0.5
      %s201 = scalar_lea.vmem %s1, 1
      %v202 = vld [vmem:[%s201] ss:$4 sm:$0x3]
      %vm203 = vcmp.gt.f32.partialorder %v202, 0.5
      %s204 = scalar_lea.vmem %s1, 2
      %v205 = vld [vmem:[%s204] ss:$4 sm:$0x3]
      %vm206 = vcmp.gt.f32.partialorder %v205, 0.5
      %s207 = scalar_lea.vmem %s1, 3
      %v208 = vld [vmem:[%s207] ss:$4 sm:$0x3]
      %vm209 = vcmp.gt.f32.partialorder %v208, 0.5
      %211 = vst [vmem:[#allocation1] ss:$2 sm:$0xff] %v198
      %v212 = vld.sshfl [vmem:[#allocation1] sm:$0xff pattern:$0x75316420]
      %v213 = vld.sshfl [vmem:[#allocation1 + $0x8] sm:$0xff pattern:$0x75316420]
      %214 = vrot.lane.b32.xlu0 %v212, 16
      %v215 = vpop.permute.xlu0 %214
      %216 = vrot.lane.b32.xlu0 %v213, 16
      %v217 = vpop.permute.xlu0 %216
      %vm218 = vcmask 130048
      %v219 = vsel %vm218, %v215, %v217
      %v222 = vsel %vm218, %v198, %v215
      %223 = vst [vmem:[#allocation1] ss:$2 sm:$0xff] %v198
      %v224 = vld.sshfl [vmem:[#allocation1] sm:$0xff pattern:$0x75316420]
      %v225 = vld.sshfl [vmem:[#allocation1 + $0x8] sm:$0xff pattern:$0x75316420]
      %226 = vrot.lane.b32.xlu0 %v224, 112
      %v227 = vpop.permute.xlu0 %226
      %228 = vrot.lane.b32.xlu0 %v225, 112
      %v229 = vpop.permute.xlu0 %228
      %vm230 = vcmask 916480
      %v231 = vsel %vm230, %v227, %v229
      %234 = vst [vmem:[#allocation1] ss:$2 sm:$0xff] %v198
      %v235 = vld.sshfl [vmem:[#allocation1 + $0x8] sm:$0xff pattern:$0x75316420]
      %v237 = vsel %vm230, %v229, %v235
      %v238 = vsel %vm206, 1, 0
      %v239 = vperm.slane %v238, 0
      %v240 = vperm.slane %v238, 1
      %vm241 = vcmp.eq.s32.totalorder %v239, 1
      %vm242 = vcmp.eq.s32.totalorder %v240, 1
      %v243 = vsel %vm241, %v231, %v222
      %v244 = vsel %vm242, %v237, %v219
      %v245 = vsel %vm209, 1, 0
      %v246 = vperm.slane %v245, 0
      %v247 = vperm.slane %v245, 1
      %vm248 = vcmp.eq.s32.totalorder %v246, 1
      %vm249 = vcmp.eq.s32.totalorder %v247, 1
      %v250 = vsel %vm248, %v222, %v231
      %v251 = vsel %vm249, %v219, %v237
      %254 = vrot.lane.b32.xlu0 %v243, 1
      %v255 = vpop.permute.xlu0 %254
      %256 = vrot.lane.b32.xlu0 %v244, 1
      %v257 = vpop.permute.xlu0 %256
      %vm258 = vcmask 7168
      %v259 = vsel %vm258, %v255, %v257
      %v262 = vsel %vm258, %v243, %v255
      %263 = vrot.lane.b32.xlu0 %v243, 127
      %v264 = vpop.permute.xlu0 %263
      %265 = vrot.lane.b32.xlu0 %v244, 127
      %v266 = vpop.permute.xlu0 %265
      %vm267 = vcmask 1039360
      %v268 = vsel %vm267, %v264, %v266
      %v271 = vsel %vm267, %v266, %v244
      %v272 = vsel %vm200, 1, 0
      %v273 = vperm.slane %v272, 0
      %v274 = vperm.slane %v272, 1
      %vm275 = vcmp.eq.s32.totalorder %v273, 1
      %vm276 = vcmp.eq.s32.totalorder %v274, 1
      %v277 = vsel %vm275, %v268, %v262
      %v278 = vsel %vm276, %v271, %v259
      %v279 = vsel %vm203, 1, 0
      %v280 = vperm.slane %v279, 0
      %v281 = vperm.slane %v279, 1
      %vm282 = vcmp.eq.s32.totalorder %v280, 1
      %vm283 = vcmp.eq.s32.totalorder %v281, 1
      %v284 = vsel %vm282, %v262, %v268
      %v285 = vsel %vm283, %v259, %v271
      %286 = vst [vmem:[#allocation1] ss:$2 sm:$0xff] %v198
      %v287 = vld.sshfl [vmem:[#allocation1] sm:$0xff pattern:$0x75316420]
      %v288 = vld.sshfl [vmem:[#allocation1 + $0x8] sm:$0xff pattern:$0x75316420]
      %289 = vrot.lane.b32.xlu0 %v287, 1
      %v290 = vpop.permute.xlu0 %289
      %291 = vrot.lane.b32.xlu0 %v288, 1
      %v292 = vpop.permute.xlu0 %291
      %v293 = vsel %vm258, %v290, %v292
      %v296 = vsel %vm258, %v198, %v290
      %297 = vst [vmem:[#allocation1] ss:$2 sm:$0xff] %v198
      %v298 = vld.sshfl [vmem:[#allocation1] sm:$0xff pattern:$0x75316420]
      %v299 = vld.sshfl [vmem:[#allocation1 + $0x8] sm:$0xff pattern:$0x75316420]
      %300 = vrot.lane.b32.xlu0 %v298, 127
      %v301 = vpop.permute.xlu0 %300
      %302 = vrot.lane.b32.xlu0 %v299, 127
      %v303 = vpop.permute.xlu0 %302
      %v304 = vsel %vm267, %v301, %v303
      %307 = vst [vmem:[#allocation1] ss:$2 sm:$0xff] %v198
      %v308 = vld.sshfl [vmem:[#allocation1 + $0x8] sm:$0xff pattern:$0x75316420]
      %v310 = vsel %vm267, %v303, %v308
      %v311 = vsel %vm275, %v304, %v296
      %v312 = vsel %vm276, %v310, %v293
      %v313 = vsel %vm282, %v296, %v304
      %v314 = vsel %vm283, %v293, %v310
      %317 = vrot.lane.b32.xlu0 %v250, 1
      %v318 = vpop.permute.xlu0 %317
      %319 = vrot.lane.b32.xlu0 %v251, 1
      %v320 = vpop.permute.xlu0 %319
      %v321 = vsel %vm258, %v318, %v320
      %v324 = vsel %vm258, %v250, %v318
      %325 = vrot.lane.b32.xlu0 %v250, 127
      %v326 = vpop.permute.xlu0 %325
      %327 = vrot.lane.b32.xlu0 %v251, 127
      %v328 = vpop.permute.xlu0 %327
      %v329 = vsel %vm267, %v326, %v328
      %v332 = vsel %vm267, %v328, %v251
      %v333 = vsel %vm275, %v329, %v324
      %v334 = vsel %vm276, %v332, %v321
      %v335 = vsel %vm282, %v324, %v329
      %v336 = vsel %vm283, %v321, %v332
      %v337 = vrot.slane %v243, 4
      %v338 = vrot.slane %v244, 4
      %v343 = vrot.slane %v311, 4
      %v344 = vrot.slane %v312, 4
      %347 = vst [vmem:[#allocation1] ss:$2 sm:$0xff] %v198
      %v348 = vld.sshfl [vmem:[#allocation1] sm:$0xff pattern:$0x75316420]
      %v349 = vld.sshfl [vmem:[#allocation1 + $0x8] sm:$0xff pattern:$0x75316420]
      %v354 = vrot.slane %v313, 4
      %v355 = vrot.slane %v314, 4
      %v358 = vrot.slane %v250, 4
      %v359 = vrot.slane %v251, 4
      %vm362 = vcmask 1043456
      %v363 = vsel %vm362, %v277, %v337
      %v364 = vsel %vm362, %v278, %v338
      %v365 = vsel %vm362, %v284, %v343
      %v366 = vsel %vm362, %v285, %v344
      %v367 = vsel %vm362, %v348, %v354
      %v368 = vsel %vm362, %v349, %v355
      %v369 = vsel %vm362, %v333, %v358
      %v370 = vsel %vm362, %v334, %v359
      %v371 = vld [vmem:[%s2] sm:$0xf]
      %vm372 = vcmask 293888
      %v374 = vsel %vm372, %v371, 0
      %v377 = vsel %vm362, %v335, 0
      %v380 = vsel %vm362, %v336, 0
      %382 = vmatpush.msra.mxu0 0.0
      %383 = vmatpush.msra.mxu0 0.0
      %384 = vmatpush.msra.mxu0 0.0
      %385 = vmatpush.msra.mxu0 0.0
      %386 = vmatpush.msra.mxu0 0.0
      %387 = vmatpush.msra.mxu0 0.0
      %388 = vmatpush.msra.mxu0 0.0
      %389 = vmatpush.msra.mxu0 0.0
      %390 = vmatpush.msra.mxu0 0.0
      %391 = vmatpush.msra.mxu0 0.0
      %392 = vmatpush.msra.mxu0 0.0
      %393 = vmatpush.msra.mxu0 %v377
      %394 = vmatpush.msra.mxu0 %v369
      %395 = vmatpush.msra.mxu0 %v367
      %396 = vmatpush.msra.mxu0 %v365
      %397 = vmatpush.msra.mxu0 %v363
      %398 = vmatmul.f32.gmra.mxu0 %v374
      %v399 = vpop.f32.mrf.mxu0
      %v400 = vadd.f32 0.0, %v399
      %401 = vdwg.mxu0
      %402 = vmatpush.msra.mxu0 0.0
      %403 = vmatpush.msra.mxu0 0.0
      %404 = vmatpush.msra.mxu0 0.0
      %405 = vmatpush.msra.mxu0 0.0
      %406 = vmatpush.msra.mxu0 0.0
      %407 = vmatpush.msra.mxu0 0.0
      %408 = vmatpush.msra.mxu0 0.0
      %409 = vmatpush.msra.mxu0 0.0
      %410 = vmatpush.msra.mxu0 0.0
      %411 = vmatpush.msra.mxu0 0.0
      %412 = vmatpush.msra.mxu0 0.0
      %413 = vmatpush.msra.mxu0 %v380
      %414 = vmatpush.msra.mxu0 %v370
      %415 = vmatpush.msra.mxu0 %v368
      %416 = vmatpush.msra.mxu0 %v366
      %417 = vmatpush.msra.mxu0 %v364
      %418 = vmatmul.f32.gmra.mxu0 %v374
      %v419 = vpop.f32.mrf.mxu0
      %v420 = vadd.f32 0.0, %v419
      %421 = vdwg.mxu0
      %v422 = vsel %vm362, %v400, 0.0
      %v423 = vsel %vm362, %v420, 0.0
      %v424 = vadd.f32 %v422, %v423
      %425 = vadd.xlane.f32.xlu0 %v424
      %v426 = vpop.xlane.xlu0 %425
      %v427 = vmul.f32 %v400, %v400
      %v428 = vmul.f32 %v420, %v420
      %v429 = vsel %vm362, %v427, 0.0
      %v430 = vsel %vm362, %v428, 0.0
      %v431 = vadd.f32 %v429, %v430
      %432 = vadd.xlane.f32.xlu0 %v431
      %v433 = vpop.xlane.xlu0 %432
      %v434 = vmul.f32 %v426, 0.00390625
      %v435 = vmul.f32 %v433, 0.00390625
      %v436 = vmul.f32 %v434, %v434
      %v437 = vsub.f32 %v435, %v436
      %v438 = vmax.f32 %v437, 0.0
      %v439 = vsub.f32 %v400, %v434
      %v440 = vsub.f32 %v420, %v434
      %v441 = vadd.f32 %v438, 1e-05
      %v442 = vrsqrt.pop %v441
      %v443 = vmul.f32 %v442, %v441
      %v444 = vmul.f32 %v443, %v442
      %v445 = vmul.f32 0.5, %v444
      %v446 = vsub.f32 1.5, %v445
      %v447 = vmul.f32 %v442, %v446
      %vm448 = vweird.f32 %v441
      %vm449 = vweird.f32 %v442
      %vm450 = vmor %vm448, %vm449
      %v451 = vsel %vm450, %v442, %v447
      %v452 = vmul.f32 %v439, %v451
      %v453 = vmul.f32 %v440, %v451
      %v454 = vmax.f32 %v452, 0.0
      %v455 = vmax.f32 %v453, 0.0
      %458 = vrot.lane.b32.xlu0 %v454, 16
      %v459 = vpop.permute.xlu0 %458
      %460 = vrot.lane.b32.xlu0 %v455, 16
      %v461 = vpop.permute.xlu0 %460
      %v462 = vsel %vm218, %v459, %v461
      %v465 = vsel %vm218, %v454, %v459
      %466 = vrot.lane.b32.xlu0 %v454, 112
      %v467 = vpop.permute.xlu0 %466
      %468 = vrot.lane.b32.xlu0 %v455, 112
      %v469 = vpop.permute.xlu0 %468
      %v470 = vsel %vm230, %v467, %v469
      %v473 = vsel %vm230, %v469, %v455
      %v474 = vsel %vm241, %v470, %v465
      %v475 = vsel %vm242, %v473, %v462
      %v476 = vsel %vm248, %v465, %v470
      %v477 = vsel %vm249, %v462, %v473
      %480 = vrot.lane.b32.xlu0 %v474, 1
      %v481 = vpop.permute.xlu0 %480
      %482 = vrot.lane.b32.xlu0 %v475, 1
      %v483 = vpop.permute.xlu0 %482
      %v484 = vsel %vm258, %v481, %v483
      %v487 = vsel %vm258, %v474, %v481
      %488 = vrot.lane.b32.xlu0 %v474, 127
      %v489 = vpop.permute.xlu0 %488
      %490 = vrot.lane.b32.xlu0 %v475, 127
      %v491 = vpop.permute.xlu0 %490
      %v492 = vsel %vm267, %v489, %v491
      %v495 = vsel %vm267, %v491, %v475
      %v496 = vsel %vm275, %v492, %v487
      %v497 = vsel %vm276, %v495, %v484
      %v498 = vsel %vm282, %v487, %v492
      %v499 = vsel %vm283, %v484, %v495
      %500 = vrot.lane.b32.xlu0 %v454, 1
      %v501 = vpop.permute.xlu0 %500
      %502 = vrot.lane.b32.xlu0 %v455, 1
      %v503 = vpop.permute.xlu0 %502
      %v504 = vsel %vm258, %v501, %v503
      %v507 = vsel %vm258, %v454, %v501
      %508 = vrot.lane.b32.xlu0 %v454, 127
      %v509 = vpop.permute.xlu0 %508
      %510 = vrot.lane.b32.xlu0 %v455, 127
      %v511 = vpop.permute.xlu0 %510
      %v512 = vsel %vm267, %v509, %v511
      %v515 = vsel %vm267, %v511, %v455
      %v516 = vsel %vm275, %v512, %v507
      %v517 = vsel %vm276, %v515, %v504
      %v518 = vsel %vm282, %v507, %v512
      %v519 = vsel %vm283, %v504, %v515
      %522 = vrot.lane.b32.xlu0 %v476, 1
      %v523 = vpop.permute.xlu0 %522
      %524 = vrot.lane.b32.xlu0 %v477, 1
      %v525 = vpop.permute.xlu0 %524
      %v526 = vsel %vm258, %v523, %v525
      %v529 = vsel %vm258, %v476, %v523
      %530 = vrot.lane.b32.xlu0 %v476, 127
      %v531 = vpop.permute.xlu0 %530
      %532 = vrot.lane.b32.xlu0 %v477, 127
      %v533 = vpop.permute.xlu0 %532
      %v534 = vsel %vm267, %v531, %v533
      %v537 = vsel %vm267, %v533, %v477
      %v538 = vsel %vm275, %v534, %v529
      %v539 = vsel %vm276, %v537, %v526
      %v540 = vsel %vm282, %v529, %v534
      %v541 = vsel %vm283, %v526, %v537
      %v542 = vrot.slane %v474, 4
      %v543 = vrot.slane %v475, 4
      %v548 = vrot.slane %v516, 4
      %v549 = vrot.slane %v517, 4
      %v554 = vrot.slane %v518, 4
      %v555 = vrot.slane %v519, 4
      %v558 = vrot.slane %v476, 4
      %v559 = vrot.slane %v477, 4
      %v562 = vsel %vm362, %v496, %v542
      %v563 = vsel %vm362, %v497, %v543
      %v564 = vsel %vm362, %v498, %v548
      %v565 = vsel %vm362, %v499, %v549
      %v566 = vsel %vm362, %v454, %v554
      %v567 = vsel %vm362, %v455, %v555
      %v568 = vsel %vm362, %v538, %v558
      %v569 = vsel %vm362, %v539, %v559
      %v570 = vld [vmem:[%s3] sm:$0xf]
      %v572 = vsel %vm372, %v570, 0
      %v575 = vsel %vm362, %v540, 0
      %v578 = vsel %vm362, %v541, 0
      %580 = vmatpush.msra.mxu0 0.0
      %581 = vmatpush.msra.mxu0 0.0
      %582 = vmatpush.msra.mxu0 0.0
      %583 = vmatpush.msra.mxu0 0.0
      %584 = vmatpush.msra.mxu0 0.0
      %585 = vmatpush.msra.mxu0 0.0
      %586 = vmatpush.msra.mxu0 0.0
      %587 = vmatpush.msra.mxu0 0.0
      %588 = vmatpush.msra.mxu0 0.0
      %589 = vmatpush.msra.mxu0 0.0
      %590 = vmatpush.msra.mxu0 0.0
      %591 = vmatpush.msra.mxu0 %v575
      %592 = vmatpush.msra.mxu0 %v568
      %593 = vmatpush.msra.mxu0 %v566
      %594 = vmatpush.msra.mxu0 %v564
      %595 = vmatpush.msra.mxu0 %v562
      %596 = vmatmul.f32.gmra.mxu0 %v572
      %v597 = vpop.f32.mrf.mxu0
      %v598 = vadd.f32 0.0, %v597
      %599 = vdwg.mxu0
      %600 = vmatpush.msra.mxu0 0.0
      %601 = vmatpush.msra.mxu0 0.0
      %602 = vmatpush.msra.mxu0 0.0
      %603 = vmatpush.msra.mxu0 0.0
      %604 = vmatpush.msra.mxu0 0.0
      %605 = vmatpush.msra.mxu0 0.0
      %606 = vmatpush.msra.mxu0 0.0
      %607 = vmatpush.msra.mxu0 0.0
      %608 = vmatpush.msra.mxu0 0.0
      %609 = vmatpush.msra.mxu0 0.0
      %610 = vmatpush.msra.mxu0 0.0
      %611 = vmatpush.msra.mxu0 %v578
      %612 = vmatpush.msra.mxu0 %v569
      %613 = vmatpush.msra.mxu0 %v567
      %614 = vmatpush.msra.mxu0 %v565
      %615 = vmatpush.msra.mxu0 %v563
      %616 = vmatmul.f32.gmra.mxu0 %v572
      %v617 = vpop.f32.mrf.mxu0
      %v618 = vadd.f32 0.0, %v617
      %619 = vdwg.mxu0
      %v620 = vsel %vm362, %v598, 0.0
      %v621 = vsel %vm362, %v618, 0.0
      %v622 = vadd.f32 %v620, %v621
      %623 = vadd.xlane.f32.xlu0 %v622
      %v624 = vpop.xlane.xlu0 %623
      %v625 = vmul.f32 %v598, %v598
      %v626 = vmul.f32 %v618, %v618
      %v627 = vsel %vm362, %v625, 0.0
      %v628 = vsel %vm362, %v626, 0.0
      %v629 = vadd.f32 %v627, %v628
      %630 = vadd.xlane.f32.xlu0 %v629
      %v631 = vpop.xlane.xlu0 %630
      %v632 = vmul.f32 %v624, 0.00390625
      %v633 = vmul.f32 %v631, 0.00390625
      %v634 = vmul.f32 %v632, %v632
      %v635 = vsub.f32 %v633, %v634
      %v636 = vmax.f32 %v635, 0.0
      %v637 = vsub.f32 %v598, %v632
      %v638 = vsub.f32 %v618, %v632
      %v639 = vadd.f32 %v636, 1e-05
      %v640 = vrsqrt.pop %v639
      %v641 = vmul.f32 %v640, %v639
      %v642 = vmul.f32 %v641, %v640
      %v643 = vmul.f32 0.5, %v642
      %v644 = vsub.f32 1.5, %v643
      %v645 = vmul.f32 %v640, %v644
      %vm646 = vweird.f32 %v639
      %vm647 = vweird.f32 %v640
      %vm648 = vmor %vm646, %vm647
      %v649 = vsel %vm648, %v640, %v645
      %v650 = vmul.f32 %v637, %v649
      %v651 = vmul.f32 %v638, %v649
      %v654 = vrot.slane %v651, 4
      %v655 = vsel %vm362, %v650, %v654
      %v657 = vadd.f32 %v198, %v655
      %658 = vst [vmem:[%s197] sm:$0xff] %v657
      %p659 = scmp.lt.s32.totalorder %s15, 1
      %s660 = scalar_select %p659, %s15, 1
      %s661 = smul.addr %s660, 2
      %s662 = smul.addr %s661, 4
      %s663 = scalar_lea.vmem %s4, %s662
      // Predicated region
      $region37: #{resnet_block.1} parent=35 // pred_check
        %p664 = pneg %p122
      $region38: #{resnet_block.1} parent=35 // pred_check_branch
        %666 = sbr.rel (%p664) target = $region40
      $region39: #{resnet_block.1} parent=35 // pred_region
        _
      $region40: #{resnet_block.1} parent=35 // pred_fallthru
        _
    $region36: #{resnet_block.1} parent=5 // pred_fallthru
      _
    %p667 = scmp.le.s32.totalorder 2, %s10
    // Predicated region
    $region41: #{resnet_block.1} parent=5 // pred_check
      %p668 = pneg %p667
    $region42: #{resnet_block.1} parent=5 // pred_check_branch
      %670 = sbr.rel (%p668) target = $region44
    $region43: #{resnet_block.1} parent=5 // pred_region
      %s671 = ssub.s32 %s10, 2
      // Predicated region
      $region45: #{resnet_block.1} parent=43 // pred_check
        %p672 = pneg %p128
      $region46: #{resnet_block.1} parent=43 // pred_check_branch
        %674 = sbr.rel (%p672) target = $region48
      $region47: #{resnet_block.1} parent=43 // pred_region
        %p675 = scmp.lt.s32.totalorder %s16, 1
        %s676 = scalar_select %p675, %s16, 1
        %s677 = smul.addr %s676, 2
        %s678 = smul.addr %s677, 4
        %s679 = scalar_lea.vmem %s4, %s678
      $region48: #{resnet_block.1} parent=43 // pred_fallthru
        _
    $region44: #{resnet_block.1} parent=5 // pred_fallthru
      _
  $region6: #{resnet_block.1} parent=0 // loop_footer
    %s14 = sadd.s32 1, %s10
  $region7: #{resnet_block.1} parent=0 // loop_footer_branch
    %9 = sbr.rel target = $region3
  $region8: #{resnet_block.1} parent=0 // loop_exit
    _

</llo_original>
